<compile_context>
chip_gen: v7x
topology: tpu7x:2x2x1
jax: 0.10.0
libtpu: 0.0.40
codegen_flags: <defaults>
</compile_context>

<pallas_src>
import functools
import math

import jax
import jax.numpy as jnp
from jax.experimental import pallas as pl
from jax.experimental.pallas import tpu as pltpu


_LANE = 128     # lane width: hidden-dim padding target (lane-dense intermediates)
_SUBLANE = 8    # f32 sublane: batch-tile granularity


def _round_up(x, m):
    return ((x + m - 1) // m) * m


def _vmem_budget_bytes():
    """~85% of this generation's physical VMEM (headroom for Mosaic scratch)."""
    try:
        cap = pltpu.get_tpu_info().vmem_capacity_bytes
    except Exception:
        cap = 128 * 1024 * 1024   # conservative fallback (v5e/v6e size)
    return int(cap * 0.85)


def _fnn_fused_kernel(x_ref, *refs, n_layers, act):
    """Fused MLP forward for one batch tile.

    refs = (w0, b0, w1, b1, ..., w_{L-1}, b_{L-1}, o_ref)
    Hidden dims are padded to multiples of 128 with zero weight rows/cols and
    zero bias, so padding is inert for any elementwise activation (act(0) feeds
    zero weight rows of the next layer).
    """
    o_ref = refs[2 * n_layers]
    h = x_ref[...].astype(jnp.float32)
    for ii in range(n_layers):
        w = refs[2 * ii][...]                       # param dtype (f32 or bf16)
        b = refs[2 * ii + 1][...].astype(jnp.float32)   # (1, N) broadcasts over rows
        # MXU matmul in the parameter dtype, f32 accumulation.
        h = jnp.dot(h.astype(w.dtype), w, preferred_element_type=jnp.float32) + b
        if ii < n_layers - 1:                       # activation between hidden layers only
            h = act(h)
    # TODO(synk): for deep/wide compute-bound configs, sub-tile the batch inside
    # the kernel so MXU (dot) of chunk j overlaps EUP (tanh) of chunk j-1.
    o_ref[...] = h.astype(o_ref.dtype)


def fnn_forward_pallas(x, padded_params, act=jnp.tanh, tile_m=512):
    """Run the whole MLP as a single pallas_call.

    x             : (M, K0) un-padded input (K0 is NOT feature-padded).
    padded_params : list of (w (K_i, N_i), b (1, N_i)); hidden dims padded to
                    128, first K and last N left at their true widths.
    """
    M, K0 = x.shape
    n_layers = len(padded_params)
    assert padded_params[0][0].shape[0] == K0, "first-layer fan_in must match x"
    n_last = padded_params[-1][0].shape[1]          # true output width (un-padded)

    # ---- batch tiling -------------------------------------------------------
    tm = min(tile_m, _round_up(M, _SUBLANE))
    # Prefer >=2 grid steps so v7x's two TensorCores both get work.
    if M > _SUBLANE and _round_up(M, tm) // tm < 2:
        tm = _round_up(pl.cdiv(M, 2), _SUBLANE)
    M_pad = _round_up(M, tm)

    # Row-pad only (no feature padding); padded rows are sliced off the output.
    if M_pad != M:
        x_in = jnp.pad(x, ((0, M_pad - M), (0, 0)))
    else:
        x_in = x

    # ---- specs --------------------------------------------------------------
    in_specs = [pl.BlockSpec((tm, K0), lambda i: (i, 0))]
    flat_args = [x_in]
    for (w, b) in padded_params:
        # Constant index_map -> resident in VMEM; single buffer (no duplication).
        in_specs.append(pl.BlockSpec(w.shape, lambda i: (0, 0),
                                     pipeline_mode=pl.Buffered(1)))
        in_specs.append(pl.BlockSpec(b.shape, lambda i: (0, 0),
                                     pipeline_mode=pl.Buffered(1)))
        flat_args.append(w)
        flat_args.append(b)

    # ---- VMEM budget / sanity check -----------------------------------------
    x_isz = jnp.dtype(x.dtype).itemsize
    p_isz = jnp.dtype(padded_params[0][0].dtype).itemsize
    param_bytes = sum(w.size + b.size for (w, b) in padded_params) * p_isz
    max_np = max(w.shape[1] for (w, _) in padded_params)
    streamed = 2 * tm * (K0 + n_last) * x_isz        # double-buffered x / y tiles
    interm = 2 * tm * max_np * 4                     # two live f32 intermediates
    needed = param_bytes + streamed + interm
    budget = _vmem_budget_bytes()
    if needed > budget:
        # TODO(synk): stream weight column blocks from HBM (emit_pipeline /
        # second grid axis over N) instead of forcing all params resident.
        raise ValueError(
            f"FNN params+activations (~{needed >> 20} MiB) exceed the VMEM "
            f"budget (~{budget >> 20} MiB); reduce tile_m or Arc, or use bf16 params.")

    # ---- cost hint for XLA's scheduler --------------------------------------
    flops = 2 * M_pad * sum(w.shape[0] * w.shape[1] for (w, _) in padded_params)
    transcend = M_pad * sum(w.shape[1] for (w, _) in padded_params[:-1])
    bytes_accessed = (M_pad * K0 * x_isz + M_pad * n_last * x_isz + param_bytes)

    kernel = functools.partial(_fnn_fused_kernel, n_layers=n_layers, act=act)
    y = pl.pallas_call(
        kernel,
        out_shape=jax.ShapeDtypeStruct((M_pad, n_last), x.dtype),
        grid=(M_pad // tm,),
        in_specs=in_specs,
        out_specs=pl.BlockSpec((tm, n_last), lambda i: (i, 0)),
        compiler_params=pltpu.CompilerParams(
            dimension_semantics=("parallel",),       # batch tiles are independent
            vmem_limit_bytes=budget,
        ),
        cost_estimate=pl.CostEstimate(flops=flops,
                                      transcendentals=transcend,
                                      bytes_accessed=bytes_accessed),
    )(*flat_args)

    return y[:M] if M_pad != M else y


class FNN:
    """JAX/Pallas re-implementation of the PyTorch FNN module.

    Arc  : list of layer widths, e.g. [in, h1, h2, out]
    func : ELEMENTWISE activation applied between hidden layers (fused in-kernel).
    input_transform / output_transform: optional plain-JAX callables applied
           outside the kernel, exactly like the PyTorch module.
    param_dtype=jnp.bfloat16 enables the native-bf16 MXU path (f32 accumulate).
    """

    def __init__(self, Arc, key, func=jnp.tanh, input_transform=None,
                 output_transform=None, dtype=jnp.float32,
                 param_dtype=jnp.float32, tile_m=512):
        self.Arc = list(Arc)
        self.func = func
        self.input_transform = input_transform
        self.output_transform = output_transform
        self.dtype = dtype
        self.tile_m = tile_m

        n_layers = len(self.Arc) - 1
        self.params = []          # un-padded (w (K, N), b (N,)) for reference use
        self.padded_params = []   # kernel params: hidden dims padded, edges un-padded
        # Deterministic init mimicking nn.Linear default: U(-1/sqrt(fan_in), +1/sqrt(fan_in))
        for ii in range(n_layers):
            fan_in, fan_out = self.Arc[ii], self.Arc[ii + 1]
            key, kw, kb = jax.random.split(key, 3)
            bound = 1.0 / math.sqrt(fan_in)
            w = jax.random.uniform(kw, (fan_in, fan_out), dtype,
                                   minval=-bound, maxval=bound)
            b = jax.random.uniform(kb, (fan_out,), dtype,
                                   minval=-bound, maxval=bound)
            self.params.append((w, b))

            # First layer keeps true K (x is never feature-padded); last layer
            # keeps true N (y is written at its true width). Hidden dims pad to 128.
            in_dim = fan_in if ii == 0 else _round_up(fan_in, _LANE)
            out_dim = fan_out if ii == n_layers - 1 else _round_up(fan_out, _LANE)
            w_pad = jnp.zeros((in_dim, out_dim), param_dtype)
            w_pad = w_pad.at[:fan_in, :fan_out].set(w.astype(param_dtype))
            b_pad = jnp.zeros((1, out_dim), param_dtype)
            b_pad = b_pad.at[0, :fan_out].set(b.astype(param_dtype))
            self.padded_params.append((w_pad, b_pad))

    def __call__(self, x):
        # TODO(synk): elementwise input/output transforms could be fused into the
        # kernel to avoid an extra HBM pass; applied here as plain JAX glue.
        if self.input_transform is not None:
            x = self.input_transform(x)
        out = fnn_forward_pallas(x, self.padded_params,
                                 act=self.func, tile_m=self.tile_m)
        if self.output_transform is not None:
            out = self.output_transform(out, x)
        return out


def _reference_forward(x, params, act=jnp.tanh):
    out = x
    for ii, (w, b) in enumerate(params):
        out = out @ w + b
        if ii < len(params) - 1:
            out = act(out)
    return out


if __name__ == "__main__":
    key = jax.random.PRNGKey(0)
    key, k_in1, k_in2 = jax.random.split(key, 3)

    Arc = [16, 32, 32, 8]          # small MLP: 16 -> 32 -> 32 -> 8
    net = FNN(Arc, key, func=jnp.tanh, input_transform=None, output_transform=None)

    # Case 1: small batch (single logical tile; grid may be split for megacore).
    batch = 8
    x = jax.random.normal(k_in1, (batch, Arc[0]), jnp.float32)
    y = jax.block_until_ready(net(x))
    y_ref = _reference_forward(x, net.params)
    assert y.shape == (batch, Arc[-1])
    assert jnp.allclose(y, y_ref, atol=1e-5, rtol=1e-5)

    # Case 2: larger, non-multiple-of-8 batch with a small tile to exercise
    # batch tiling (grid > 1) and row padding / row slicing.
    net.tile_m = 64
    batch2 = 150
    x2 = jax.random.normal(k_in2, (batch2, Arc[0]), jnp.float32)
    y2 = jax.block_until_ready(net(x2))
    y2_ref = _reference_forward(x2, net.params)
    assert y2.shape == (batch2, Arc[-1])
    assert jnp.allclose(y2, y2_ref, atol=1e-5, rtol=1e-5)

    print("KERNEL_OK")
</pallas_src>

<mosaic_0001>
module attributes {stable_mosaic.version = 11 : i64} {
  func.func @_fnn_fused_kernel(%arg0: i32, %arg1: memref<8x16xf32, #tpu.memory_space<vmem>>, %arg2: memref<16x128xf32, #tpu.memory_space<vmem>>, %arg3: memref<1x128xf32, #tpu.memory_space<vmem>>, %arg4: memref<128x128xf32, #tpu.memory_space<vmem>>, %arg5: memref<1x128xf32, #tpu.memory_space<vmem>>, %arg6: memref<128x8xf32, #tpu.memory_space<vmem>>, %arg7: memref<1x8xf32, #tpu.memory_space<vmem>>, %arg8: memref<8x8xf32, #tpu.memory_space<vmem>>) attributes {dimension_semantics = [#tpu.dimension_semantics<parallel>], iteration_bounds = array<i64: 1>, scalar_prefetch = 0 : i64, scratch_operands = 0 : i64, tpu.core_type = #tpu.core_type<tc>, window_params = [{transform_indices = @transform_0, window_bounds = array<i64: 8, 16>}, {pipeline_mode = #tpu.pipeline_mode<synchronous>, transform_indices = @transform_1, window_bounds = array<i64: 16, 128>}, {pipeline_mode = #tpu.pipeline_mode<synchronous>, transform_indices = @transform_2, window_bounds = array<i64: 1, 128>}, {pipeline_mode = #tpu.pipeline_mode<synchronous>, transform_indices = @transform_3, window_bounds = array<i64: 128, 128>}, {pipeline_mode = #tpu.pipeline_mode<synchronous>, transform_indices = @transform_4, window_bounds = array<i64: 1, 128>}, {pipeline_mode = #tpu.pipeline_mode<synchronous>, transform_indices = @transform_5, window_bounds = array<i64: 128, 8>}, {pipeline_mode = #tpu.pipeline_mode<synchronous>, transform_indices = @transform_6, window_bounds = array<i64: 1, 8>}, {transform_indices = @transform_7, window_bounds = array<i64: 8, 8>}]} {
    %c0 = arith.constant 0 : index
    %c0_0 = arith.constant 0 : index
    %0 = vector.load %arg1[%c0, %c0_0] : memref<8x16xf32, #tpu.memory_space<vmem>>, vector<8x16xf32>
    %c0_1 = arith.constant 0 : index
    %c0_2 = arith.constant 0 : index
    %1 = vector.load %arg2[%c0_1, %c0_2] : memref<16x128xf32, #tpu.memory_space<vmem>>, vector<16x128xf32>
    %c0_3 = arith.constant 0 : index
    %c0_4 = arith.constant 0 : index
    %2 = vector.load %arg3[%c0_3, %c0_4] : memref<1x128xf32, #tpu.memory_space<vmem>>, vector<1x128xf32>
    %cst = arith.constant dense<0.000000e+00> : vector<8x128xf32>
    %3 = tpu.matmul %0, %1, %cst {dimension_numbers = #tpu.dot_dimension_numbers<[1], [0], [0], [1], [0, 0, 1, 1], [], []>} : vector<8x16xf32>, vector<16x128xf32>, vector<8x128xf32> -> vector<8x128xf32>
    %4 = vector.broadcast %2 : vector<1x128xf32> to vector<8x128xf32>
    %5 = arith.addf %3, %4 : vector<8x128xf32>
    %6 = math.tanh %5 : vector<8x128xf32>
    %c0_5 = arith.constant 0 : index
    %c0_6 = arith.constant 0 : index
    %7 = vector.load %arg4[%c0_5, %c0_6] : memref<128x128xf32, #tpu.memory_space<vmem>>, vector<128x128xf32>
    %c0_7 = arith.constant 0 : index
    %c0_8 = arith.constant 0 : index
    %8 = vector.load %arg5[%c0_7, %c0_8] : memref<1x128xf32, #tpu.memory_space<vmem>>, vector<1x128xf32>
    %cst_9 = arith.constant dense<0.000000e+00> : vector<8x128xf32>
    %9 = tpu.matmul %6, %7, %cst_9 {dimension_numbers = #tpu.dot_dimension_numbers<[1], [0], [0], [1], [0, 0, 1, 1], [], []>} : vector<8x128xf32>, vector<128x128xf32>, vector<8x128xf32> -> vector<8x128xf32>
    %10 = vector.broadcast %8 : vector<1x128xf32> to vector<8x128xf32>
    %11 = arith.addf %9, %10 : vector<8x128xf32>
    %12 = math.tanh %11 : vector<8x128xf32>
    %c0_10 = arith.constant 0 : index
    %c0_11 = arith.constant 0 : index
    %13 = vector.load %arg6[%c0_10, %c0_11] : memref<128x8xf32, #tpu.memory_space<vmem>>, vector<128x8xf32>
    %c0_12 = arith.constant 0 : index
    %c0_13 = arith.constant 0 : index
    %14 = vector.load %arg7[%c0_12, %c0_13] : memref<1x8xf32, #tpu.memory_space<vmem>>, vector<1x8xf32>
    %cst_14 = arith.constant dense<0.000000e+00> : vector<8x8xf32>
    %15 = tpu.matmul %12, %13, %cst_14 {dimension_numbers = #tpu.dot_dimension_numbers<[1], [0], [0], [1], [0, 0, 1, 1], [], []>} : vector<8x128xf32>, vector<128x8xf32>, vector<8x8xf32> -> vector<8x8xf32>
    %16 = vector.broadcast %14 : vector<1x8xf32> to vector<8x8xf32>
    %17 = arith.addf %15, %16 : vector<8x8xf32>
    %c0_15 = arith.constant 0 : index
    %c0_16 = arith.constant 0 : index
    %18 = vector.load %arg8[%c0_15, %c0_16] : memref<8x8xf32, #tpu.memory_space<vmem>>, vector<8x8xf32>
    tpu.vector_store %arg8[%c0_15, %c0_16], %17 {strides = array<i32>} : memref<8x8xf32, #tpu.memory_space<vmem>>, vector<8x8xf32>,
    return
  }
  func.func @transform_0(%arg0: i32) -> (i32, i32) {
    %c0_i32 = arith.constant 0 : i32
    %c0_i32_0 = arith.constant 0 : i32
    return %arg0, %c0_i32 : i32, i32
  }
  func.func @transform_1(%arg0: i32) -> (i32, i32) {
    %c0_i32 = arith.constant 0 : i32
    %c0_i32_0 = arith.constant 0 : i32
    %c0_i32_1 = arith.constant 0 : i32
    return %c0_i32, %c0_i32_0 : i32, i32
  }
  func.func @transform_2(%arg0: i32) -> (i32, i32) {
    %c0_i32 = arith.constant 0 : i32
    %c0_i32_0 = arith.constant 0 : i32
    %c0_i32_1 = arith.constant 0 : i32
    return %c0_i32, %c0_i32_0 : i32, i32
  }
  func.func @transform_3(%arg0: i32) -> (i32, i32) {
    %c0_i32 = arith.constant 0 : i32
    %c0_i32_0 = arith.constant 0 : i32
    %c0_i32_1 = arith.constant 0 : i32
    return %c0_i32, %c0_i32_0 : i32, i32
  }
  func.func @transform_4(%arg0: i32) -> (i32, i32) {
    %c0_i32 = arith.constant 0 : i32
    %c0_i32_0 = arith.constant 0 : i32
    %c0_i32_1 = arith.constant 0 : i32
    return %c0_i32, %c0_i32_0 : i32, i32
  }
  func.func @transform_5(%arg0: i32) -> (i32, i32) {
    %c0_i32 = arith.constant 0 : i32
    %c0_i32_0 = arith.constant 0 : i32
    %c0_i32_1 = arith.constant 0 : i32
    return %c0_i32, %c0_i32_0 : i32, i32
  }
  func.func @transform_6(%arg0: i32) -> (i32, i32) {
    %c0_i32 = arith.constant 0 : i32
    %c0_i32_0 = arith.constant 0 : i32
    %c0_i32_1 = arith.constant 0 : i32
    return %c0_i32, %c0_i32_0 : i32, i32
  }
  func.func @transform_7(%arg0: i32) -> (i32, i32) {
    %c0_i32 = arith.constant 0 : i32
    %c0_i32_0 = arith.constant 0 : i32
    return %arg0, %c0_i32 : i32, i32
  }
}

</mosaic_0001>

<llo_original>
// kernel: tpu_custom_call.1
$region0: #{tpu_custom_call.1}
  #allocation0 [shape = 'u32[]', space=smem, size = 0x4, offset = 0x4, fixed_abs, tag = 'smem constant byte address 0x4 - core index']
  #allocation1 [shape = 'u32[144,128]{1,0:T(1,128)}', space=vmem, size = 0x12000, scoped, tag = 'internal scratch']
  %s0 = inlined_call_operand.hbm [shape: f32[8,16], index: 0, kind: input, shape index: {}]
  %s1 = inlined_call_operand.hbm [shape: f32[16,128], index: 1, kind: input, shape index: {}]
  %s2 = inlined_call_operand.hbm [shape: f32[1,128], index: 2, kind: input, shape index: {}]
  %s3 = inlined_call_operand.hbm [shape: f32[128,128], index: 3, kind: input, shape index: {}]
  %s4 = inlined_call_operand.hbm [shape: f32[1,128], index: 4, kind: input, shape index: {}]
  %s5 = inlined_call_operand.hbm [shape: f32[128,8], index: 5, kind: input, shape index: {}]
  %s6 = inlined_call_operand.hbm [shape: f32[1,8], index: 6, kind: input, shape index: {}]
  %s7 = inlined_call_operand.hbm [shape: f32[8,8], index: 7, kind: output, shape index: {}]
  %s8 = sld [smem:[#allocation0]]
  $region66: #{tpu_custom_call.1} parent=0
    _
  %s10 = ssub.s32 1, %s8
  %s11 = scalar_select 0, %s10, %s8
  $region1: #{tpu_custom_call.1} parent=0
    #allocation2 [shape = 'u8[4096]{0}', space=vmem, size = 0x1000, scoped, tag = 'input window, operand 0, single buffered']
    #allocation3 [shape = 's32[1]{0}', space=sflag, size = 0x4, scoped, tag = 'scoped memory for tpu_custom_call.1']
    #allocation4 [shape = 's32[1]{0}', space=sflag, size = 0x4, scoped, tag = 'scoped memory for tpu_custom_call.1']
    #allocation5 [shape = 'u8[8192]{0}', space=vmem, size = 0x2000, scoped, tag = 'input window, operand 1, single buffered']
    #allocation6 [shape = 's32[1]{0}', space=sflag, size = 0x4, scoped, tag = 'scoped memory for tpu_custom_call.1']
    #allocation7 [shape = 'u8[512]{0}', space=vmem, size = 0x400, scoped, tag = 'input window, operand 2, single buffered']
    #allocation8 [shape = 'u8[65536]{0}', space=vmem, size = 0x10000, scoped, tag = 'input window, operand 3, single buffered']
    #allocation9 [shape = 's32[1]{0}', space=sflag, size = 0x4, scoped, tag = 'scoped memory for tpu_custom_call.1']
    #allocation10 [shape = 'u8[512]{0}', space=vmem, size = 0x400, scoped, tag = 'input window, operand 4, single buffered']
    #allocation11 [shape = 'u8[65536]{0}', space=vmem, size = 0x10000, scoped, tag = 'input window, operand 5, single buffered']
    #allocation12 [shape = 's32[1]{0}', space=sflag, size = 0x4, scoped, tag = 'scoped memory for tpu_custom_call.1']
    #allocation13 [shape = 'u8[512]{0}', space=vmem, size = 0x400, scoped, tag = 'input window, operand 6, single buffered']
    #allocation14 [shape = 'u8[4096]{0}', space=vmem, size = 0x1000, scoped, tag = 'output window, operand 0, single buffered']
    %12 = vsyncpa [#allocation3], 0
    %13 = vsyncpa [#allocation6], 0
    %14 = vsyncpa [#allocation9], 0
    %15 = vsyncpa [#allocation12], 0
    %16 = vsyncpa [#allocation4], 0
    // Predicated region
    $region2: #{tpu_custom_call.1} parent=1 // pred_check
      _
    $region3: #{tpu_custom_call.1} parent=1 // pred_check_branch
      %18 = sbr.rel (0) target = $region5
    $region4: #{tpu_custom_call.1} parent=1 // pred_region
      %s20 = ssub.s32 128, 128
      %21 = vsyncadd [#allocation3], %s20
      %s23 = sshll.u32 [#allocation2], 4
      %s24 = int_to_ptr.vmem [resolvable:$true] %s23
      %26 = dma.hbm_to_vmem [thread:$0]  %s0, 128, %s24, [#allocation3]
    $region5: #{tpu_custom_call.1} parent=1 // pred_fallthru
      _
    // Predicated region
    $region6: #{tpu_custom_call.1} parent=1 // pred_check
      _
    $region7: #{tpu_custom_call.1} parent=1 // pred_check_branch
      %28 = sbr.rel (0) target = $region9
    $region8: #{tpu_custom_call.1} parent=1 // pred_region
      %s30 = ssub.s32 256, 256
      %31 = vsyncadd [#allocation6], %s30
      %s32 = sshll.u32 [#allocation5], 4
      %s33 = int_to_ptr.vmem [resolvable:$true] %s32
      %38 = dma.hbm_to_vmem [thread:$0]  %s1, 256, %s33, [#allocation6], 128, 128, 8
    $region9: #{tpu_custom_call.1} parent=1 // pred_fallthru
      _
    // Predicated region
    $region10: #{tpu_custom_call.1} parent=1 // pred_check
      _
    $region11: #{tpu_custom_call.1} parent=1 // pred_check_branch
      %40 = sbr.rel (0) target = $region13
    $region12: #{tpu_custom_call.1} parent=1 // pred_region
      %s42 = ssub.s32 16, 16
      %43 = vsyncadd [#allocation6], %s42
      %s45 = sshll.u32 [#allocation7], 4
      %s46 = int_to_ptr.vmem [resolvable:$true] %s45
      %48 = dma.hbm_to_vmem [thread:$0]  %s2, 16, %s46, [#allocation6]
    $region13: #{tpu_custom_call.1} parent=1 // pred_fallthru
      _
    // Predicated region
    $region14: #{tpu_custom_call.1} parent=1 // pred_check
      _
    $region15: #{tpu_custom_call.1} parent=1 // pred_check_branch
      %50 = sbr.rel (0) target = $region17
    $region16: #{tpu_custom_call.1} parent=1 // pred_region
      %s52 = ssub.s32 2048, 2048
      %53 = vsyncadd [#allocation9], %s52
      %s54 = sshll.u32 [#allocation8], 4
      %s55 = int_to_ptr.vmem [resolvable:$true] %s54
      %60 = dma.hbm_to_vmem [thread:$0]  %s3, 2048, %s55, [#allocation9], 128, 128, 8
    $region17: #{tpu_custom_call.1} parent=1 // pred_fallthru
      _
    // Predicated region
    $region18: #{tpu_custom_call.1} parent=1 // pred_check
      _
    $region19: #{tpu_custom_call.1} parent=1 // pred_check_branch
      %62 = sbr.rel (0) target = $region21
    $region20: #{tpu_custom_call.1} parent=1 // pred_region
      %s64 = ssub.s32 16, 16
      %65 = vsyncadd [#allocation9], %s64
      %s67 = sshll.u32 [#allocation10], 4
      %s68 = int_to_ptr.vmem [resolvable:$true] %s67
      %70 = dma.hbm_to_vmem [thread:$0]  %s4, 16, %s68, [#allocation9]
    $region21: #{tpu_custom_call.1} parent=1 // pred_fallthru
      _
    // Predicated region
    $region22: #{tpu_custom_call.1} parent=1 // pred_check
      _
    $region23: #{tpu_custom_call.1} parent=1 // pred_check_branch
      %72 = sbr.rel (0) target = $region25
    $region24: #{tpu_custom_call.1} parent=1 // pred_region
      %s74 = ssub.s32 2048, 2048
      %75 = vsyncadd [#allocation12], %s74
      %s76 = sshll.u32 [#allocation11], 4
      %s77 = int_to_ptr.vmem [resolvable:$true] %s76
      %82 = dma.hbm_to_vmem [thread:$0]  %s5, 2048, %s77, [#allocation12], 128, 128, 8
    $region25: #{tpu_custom_call.1} parent=1 // pred_fallthru
      _
    // Predicated region
    $region26: #{tpu_custom_call.1} parent=1 // pred_check
      _
    $region27: #{tpu_custom_call.1} parent=1 // pred_check_branch
      %84 = sbr.rel (0) target = $region29
    $region28: #{tpu_custom_call.1} parent=1 // pred_region
      %s86 = ssub.s32 16, 16
      %87 = vsyncadd [#allocation12], %s86
      %s89 = sshll.u32 [#allocation13], 4
      %s90 = int_to_ptr.vmem [resolvable:$true] %s89
      %92 = dma.hbm_to_vmem [thread:$0]  %s6, 16, %s90, [#allocation12]
    $region29: #{tpu_custom_call.1} parent=1 // pred_fallthru
      _
    // Predicated region
    $region30: #{tpu_custom_call.1} parent=1 // pred_check
      _
    $region31: #{tpu_custom_call.1} parent=1 // pred_check_branch
      %94 = sbr.rel (0) target = $region33
    $region32: #{tpu_custom_call.1} parent=1 // pred_region
      %95 = dma.done [#allocation3], 128
    $region33: #{tpu_custom_call.1} parent=1 // pred_fallthru
      _
    // Predicated region
    $region34: #{tpu_custom_call.1} parent=1 // pred_check
      _
    $region35: #{tpu_custom_call.1} parent=1 // pred_check_branch
      %97 = sbr.rel (0) target = $region37
    $region36: #{tpu_custom_call.1} parent=1 // pred_region
      %98 = dma.done [#allocation6], 256
    $region37: #{tpu_custom_call.1} parent=1 // pred_fallthru
      _
    // Predicated region
    $region38: #{tpu_custom_call.1} parent=1 // pred_check
      _
    $region39: #{tpu_custom_call.1} parent=1 // pred_check_branch
      %100 = sbr.rel (0) target = $region41
    $region40: #{tpu_custom_call.1} parent=1 // pred_region
      %101 = dma.done [#allocation6], 16
    $region41: #{tpu_custom_call.1} parent=1 // pred_fallthru
      _
    // Predicated region
    $region42: #{tpu_custom_call.1} parent=1 // pred_check
      _
    $region43: #{tpu_custom_call.1} parent=1 // pred_check_branch
      %103 = sbr.rel (0) target = $region45
    $region44: #{tpu_custom_call.1} parent=1 // pred_region
      %104 = dma.done [#allocation9], 2048
    $region45: #{tpu_custom_call.1} parent=1 // pred_fallthru
      _
    // Predicated region
    $region46: #{tpu_custom_call.1} parent=1 // pred_check
      _
    $region47: #{tpu_custom_call.1} parent=1 // pred_check_branch
      %106 = sbr.rel (0) target = $region49
    $region48: #{tpu_custom_call.1} parent=1 // pred_region
      %107 = dma.done [#allocation9], 16
    $region49: #{tpu_custom_call.1} parent=1 // pred_fallthru
      _
    // Predicated region
    $region50: #{tpu_custom_call.1} parent=1 // pred_check
      _
    $region51: #{tpu_custom_call.1} parent=1 // pred_check_branch
      %109 = sbr.rel (0) target = $region53
    $region52: #{tpu_custom_call.1} parent=1 // pred_region
      %110 = dma.done [#allocation12], 2048
    $region53: #{tpu_custom_call.1} parent=1 // pred_fallthru
      _
    // Predicated region
    $region54: #{tpu_custom_call.1} parent=1 // pred_check
      _
    $region55: #{tpu_custom_call.1} parent=1 // pred_check_branch
      %112 = sbr.rel (0) target = $region57
    $region56: #{tpu_custom_call.1} parent=1 // pred_region
      %113 = dma.done [#allocation12], 16
    $region57: #{tpu_custom_call.1} parent=1 // pred_fallthru
      _
    %v114 = vld [vmem:[#allocation2] sm:$0xff]
    %v115 = vld [vmem:[#allocation5] sm:$0xff]
    %v116 = vld [vmem:[#allocation5 + $0x8] sm:$0xff]
    %v117 = vld [vmem:[#allocation7] sm:$0x1]
    %v119 = vlaneseq
    %v120 = vshrl.u32 %v119, 7
    %v121 = vsub.s32 0, %v120
    %v122 = vrot.slane %v117, %v121
    %vm124 = vcmask 130048
    %v126 = vsel %vm124, %v114, 0
    %128 = vmatprep.subr.mxu0 0.0
    %129 = vmatpush1.msra.mxu0 %v115
    %130 = vmatprep.subr.mxu0 0.0
    %131 = vmatpush1.msra.mxu0 %v116
    %132 = vmatprep.subr.mxu0 0.0
    %133 = vmatpush1.msra.mxu0 0.0
    %134 = vmatprep.subr.mxu0 0.0
    %135 = vmatpush1.msra.mxu0 0.0
    %136 = vmatprep.subr.mxu0 0.0
    %137 = vmatpush1.msra.mxu0 0.0
    %138 = vmatprep.subr.mxu0 0.0
    %139 = vmatpush1.msra.mxu0 0.0
    %140 = vmatprep.subr.mxu0 0.0
    %141 = vmatpush1.msra.mxu0 0.0
    %142 = vmatprep.subr.mxu0 0.0
    %143 = vmatpush1.msra.mxu0 0.0
    %144 = vmatprep.subr.mxu0 0.0
    %145 = vmatpush1.msra.mxu0 0.0
    %146 = vmatprep.subr.mxu0 0.0
    %147 = vmatpush1.msra.mxu0 0.0
    %148 = vmatprep.subr.mxu0 0.0
    %149 = vmatpush1.msra.mxu0 0.0
    %150 = vmatprep.subr.mxu0 0.0
    %151 = vmatpush1.msra.mxu0 0.0
    %152 = vmatprep.subr.mxu0 0.0
    %153 = vmatpush1.msra.mxu0 0.0
    %154 = vmatprep.subr.mxu0 0.0
    %155 = vmatpush1.msra.mxu0 0.0
    %156 = vmatprep.subr.mxu0 0.0
    %157 = vmatpush1.msra.mxu0 0.0
    %158 = vmatprep.subr.mxu0 0.0
    %159 = vmatpush1.msra.mxu0 0.0
    %160 = vmatprep.subr.mxu0 0.0
    %161 = vmatpush1.msra.mxu0 0.0
    %162 = vmatprep.subr.mxu0 0.0
    %163 = vmatpush1.msra.mxu0 0.0
    %164 = vmatprep.subr.mxu0 0.0
    %165 = vmatpush1.msra.mxu0 0.0
    %166 = vmatprep.subr.mxu0 0.0
    %167 = vmatpush1.msra.mxu0 0.0
    %168 = vmatprep.subr.mxu0 0.0
    %169 = vmatpush1.msra.mxu0 0.0
    %170 = vmatprep.subr.mxu0 0.0
    %171 = vmatpush1.msra.mxu0 0.0
    %172 = vmatprep.subr.mxu0 0.0
    %173 = vmatpush1.msra.mxu0 0.0
    %174 = vmatprep.subr.mxu0 0.0
    %175 = vmatpush1.msra.mxu0 0.0
    %176 = vmatprep.subr.mxu0 0.0
    %177 = vmatpush1.msra.mxu0 0.0
    %178 = vmatprep.subr.mxu0 0.0
    %179 = vmatpush1.msra.mxu0 0.0
    %180 = vmatprep.subr.mxu0 0.0
    %181 = vmatpush1.msra.mxu0 0.0
    %182 = vmatprep.subr.mxu0 0.0
    %183 = vmatpush1.msra.mxu0 0.0
    %184 = vmatprep.subr.mxu0 0.0
    %185 = vmatpush1.msra.mxu0 0.0
    %186 = vmatprep.subr.mxu0 0.0
    %187 = vmatpush1.msra.mxu0 0.0
    %188 = vmatprep.subr.mxu0 0.0
    %189 = vmatpush1.msra.mxu0 0.0
    %190 = vmatprep.subr.mxu0 0.0
    %191 = vmatpush1.msra.mxu0 0.0
    %192 = vmatprep.mubr.f32.mxu0 0.0
    %193 = vmatmul.mubr.f32.gmra.mrb[0].mxu0 %v126
    %v194 = vpop.f32.mrb[0].mxu0
    %v195 = vadd.f32 %v122, %v194
    %v196 = vpop.f32.mrb[0].mxu0
    %197 = vdwg.mxu0
    %v198 = vtanh.pop %v195
    %v199 = vld [vmem:[#allocation8] sm:$0xff]
    %v200 = vld [vmem:[#allocation8 + $0x8] sm:$0xff]
    %v201 = vld [vmem:[#allocation8 + $0x10] sm:$0xff]
    %v202 = vld [vmem:[#allocation8 + $0x18] sm:$0xff]
    %v203 = vld [vmem:[#allocation8 + $0x20] sm:$0xff]
    %v204 = vld [vmem:[#allocation8 + $0x28] sm:$0xff]
    %v205 = vld [vmem:[#allocation8 + $0x30] sm:$0xff]
    %v206 = vld [vmem:[#allocation8 + $0x38] sm:$0xff]
    %v207 = vld [vmem:[#allocation8 + $0x40] sm:$0xff]
    %v208 = vld [vmem:[#allocation8 + $0x48] sm:$0xff]
    %v209 = vld [vmem:[#allocation8 + $0x50] sm:$0xff]
    %v210 = vld [vmem:[#allocation8 + $0x58] sm:$0xff]
    %v211 = vld [vmem:[#allocation8 + $0x60] sm:$0xff]
    %v212 = vld [vmem:[#allocation8 + $0x68] sm:$0xff]
    %v213 = vld [vmem:[#allocation8 + $0x70] sm:$0xff]
    %v214 = vld [vmem:[#allocation8 + $0x78] sm:$0xff]
    %v215 = vld [vmem:[#allocation10] sm:$0x1]
    %v217 = vlaneseq
    %v218 = vshrl.u32 %v217, 7
    %v219 = vsub.s32 0, %v218
    %v220 = vrot.slane %v215, %v219
    %222 = vmatprep.subr.mxu0 0.0
    %223 = vmatpush1.msra.mxu0 %v199
    %224 = vmatprep.subr.mxu0 0.0
    %225 = vmatpush1.msra.mxu0 %v200
    %226 = vmatprep.subr.mxu0 0.0
    %227 = vmatpush1.msra.mxu0 %v201
    %228 = vmatprep.subr.mxu0 0.0
    %229 = vmatpush1.msra.mxu0 %v202
    %230 = vmatprep.subr.mxu0 0.0
    %231 = vmatpush1.msra.mxu0 %v203
    %232 = vmatprep.subr.mxu0 0.0
    %233 = vmatpush1.msra.mxu0 %v204
    %234 = vmatprep.subr.mxu0 0.0
    %235 = vmatpush1.msra.mxu0 %v205
    %236 = vmatprep.subr.mxu0 0.0
    %237 = vmatpush1.msra.mxu0 %v206
    %238 = vmatprep.subr.mxu0 0.0
    %239 = vmatpush1.msra.mxu0 %v207
    %240 = vmatprep.subr.mxu0 0.0
    %241 = vmatpush1.msra.mxu0 %v208
    %242 = vmatprep.subr.mxu0 0.0
    %243 = vmatpush1.msra.mxu0 %v209
    %244 = vmatprep.subr.mxu0 0.0
    %245 = vmatpush1.msra.mxu0 %v210
    %246 = vmatprep.subr.mxu0 0.0
    %247 = vmatpush1.msra.mxu0 %v211
    %248 = vmatprep.subr.mxu0 0.0
    %249 = vmatpush1.msra.mxu0 %v212
    %250 = vmatprep.subr.mxu0 0.0
    %251 = vmatpush1.msra.mxu0 %v213
    %252 = vmatprep.subr.mxu0 0.0
    %253 = vmatpush1.msra.mxu0 %v214
    %254 = vmatprep.subr.mxu0 0.0
    %255 = vmatpush1.msra.mxu0 0.0
    %256 = vmatprep.subr.mxu0 0.0
    %257 = vmatpush1.msra.mxu0 0.0
    %258 = vmatprep.subr.mxu0 0.0
    %259 = vmatpush1.msra.mxu0 0.0
    %260 = vmatprep.subr.mxu0 0.0
    %261 = vmatpush1.msra.mxu0 0.0
    %262 = vmatprep.subr.mxu0 0.0
    %263 = vmatpush1.msra.mxu0 0.0
    %264 = vmatprep.subr.mxu0 0.0
    %265 = vmatpush1.msra.mxu0 0.0
    %266 = vmatprep.subr.mxu0 0.0
    %267 = vmatpush1.msra.mxu0 0.0
    %268 = vmatprep.subr.mxu0 0.0
    %269 = vmatpush1.msra.mxu0 0.0
    %270 = vmatprep.subr.mxu0 0.0
    %271 = vmatpush1.msra.mxu0 0.0
    %272 = vmatprep.subr.mxu0 0.0
    %273 = vmatpush1.msra.mxu0 0.0
    %274 = vmatprep.subr.mxu0 0.0
    %275 = vmatpush1.msra.mxu0 0.0
    %276 = vmatprep.subr.mxu0 0.0
    %277 = vmatpush1.msra.mxu0 0.0
    %278 = vmatprep.subr.mxu0 0.0
    %279 = vmatpush1.msra.mxu0 0.0
    %280 = vmatprep.subr.mxu0 0.0
    %281 = vmatpush1.msra.mxu0 0.0
    %282 = vmatprep.subr.mxu0 0.0
    %283 = vmatpush1.msra.mxu0 0.0
    %284 = vmatprep.subr.mxu0 0.0
    %285 = vmatpush1.msra.mxu0 0.0
    %286 = vmatprep.mubr.f32.mxu0 0.0
    %287 = vmatmul.mubr.f32.gmra.mrb[0].mxu0 %v198
    %v288 = vpop.f32.mrb[0].mxu0
    %v289 = vadd.f32 %v220, %v288
    %v290 = vpop.f32.mrb[0].mxu0
    %291 = vdwg.mxu0
    %v292 = vtanh.pop %v289
    %v293 = vld [vmem:[#allocation11] sm:$0xff]
    %v294 = vld [vmem:[#allocation11 + $0x8] sm:$0xff]
    %v295 = vld [vmem:[#allocation11 + $0x10] sm:$0xff]
    %v296 = vld [vmem:[#allocation11 + $0x18] sm:$0xff]
    %v297 = vld [vmem:[#allocation11 + $0x20] sm:$0xff]
    %v298 = vld [vmem:[#allocation11 + $0x28] sm:$0xff]
    %v299 = vld [vmem:[#allocation11 + $0x30] sm:$0xff]
    %v300 = vld [vmem:[#allocation11 + $0x38] sm:$0xff]
    %v301 = vld [vmem:[#allocation11 + $0x40] sm:$0xff]
    %v302 = vld [vmem:[#allocation11 + $0x48] sm:$0xff]
    %v303 = vld [vmem:[#allocation11 + $0x50] sm:$0xff]
    %v304 = vld [vmem:[#allocation11 + $0x58] sm:$0xff]
    %v305 = vld [vmem:[#allocation11 + $0x60] sm:$0xff]
    %v306 = vld [vmem:[#allocation11 + $0x68] sm:$0xff]
    %v307 = vld [vmem:[#allocation11 + $0x70] sm:$0xff]
    %v308 = vld [vmem:[#allocation11 + $0x78] sm:$0xff]
    %v309 = vld [vmem:[#allocation13] sm:$0x1]
    %v311 = vlaneseq
    %v312 = vshrl.u32 %v311, 7
    %v313 = vsub.s32 0, %v312
    %v314 = vrot.slane %v309, %v313
    %316 = vmatprep.subr.mxu0 0.0
    %317 = vmatpush1.msra.mxu0 %v293
    %318 = vmatprep.subr.mxu0 0.0
    %319 = vmatpush1.msra.mxu0 %v294
    %320 = vmatprep.subr.mxu0 0.0
    %321 = vmatpush1.msra.mxu0 %v295
    %322 = vmatprep.subr.mxu0 0.0
    %323 = vmatpush1.msra.mxu0 %v296
    %324 = vmatprep.subr.mxu0 0.0
    %325 = vmatpush1.msra.mxu0 %v297
    %326 = vmatprep.subr.mxu0 0.0
    %327 = vmatpush1.msra.mxu0 %v298
    %328 = vmatprep.subr.mxu0 0.0
    %329 = vmatpush1.msra.mxu0 %v299
    %330 = vmatprep.subr.mxu0 0.0
    %331 = vmatpush1.msra.mxu0 %v300
    %332 = vmatprep.subr.mxu0 0.0
    %333 = vmatpush1.msra.mxu0 %v301
    %334 = vmatprep.subr.mxu0 0.0
    %335 = vmatpush1.msra.mxu0 %v302
    %336 = vmatprep.subr.mxu0 0.0
    %337 = vmatpush1.msra.mxu0 %v303
    %338 = vmatprep.subr.mxu0 0.0
    %339 = vmatpush1.msra.mxu0 %v304
    %340 = vmatprep.subr.mxu0 0.0
    %341 = vmatpush1.msra.mxu0 %v305
    %342 = vmatprep.subr.mxu0 0.0
    %343 = vmatpush1.msra.mxu0 %v306
    %344 = vmatprep.subr.mxu0 0.0
    %345 = vmatpush1.msra.mxu0 %v307
    %346 = vmatprep.subr.mxu0 0.0
    %347 = vmatpush1.msra.mxu0 %v308
    %348 = vmatprep.subr.mxu0 0.0
    %349 = vmatpush1.msra.mxu0 0.0
    %350 = vmatprep.subr.mxu0 0.0
    %351 = vmatpush1.msra.mxu0 0.0
    %352 = vmatprep.subr.mxu0 0.0
    %353 = vmatpush1.msra.mxu0 0.0
    %354 = vmatprep.subr.mxu0 0.0
    %355 = vmatpush1.msra.mxu0 0.0
    %356 = vmatprep.subr.mxu0 0.0
    %357 = vmatpush1.msra.mxu0 0.0
    %358 = vmatprep.subr.mxu0 0.0
    %359 = vmatpush1.msra.mxu0 0.0
    %360 = vmatprep.subr.mxu0 0.0
    %361 = vmatpush1.msra.mxu0 0.0
    %362 = vmatprep.subr.mxu0 0.0
    %363 = vmatpush1.msra.mxu0 0.0
    %364 = vmatprep.subr.mxu0 0.0
    %365 = vmatpush1.msra.mxu0 0.0
    %366 = vmatprep.subr.mxu0 0.0
    %367 = vmatpush1.msra.mxu0 0.0
    %368 = vmatprep.subr.mxu0 0.0
    %369 = vmatpush1.msra.mxu0 0.0
    %370 = vmatprep.subr.mxu0 0.0
    %371 = vmatpush1.msra.mxu0 0.0
    %372 = vmatprep.subr.mxu0 0.0
    %373 = vmatpush1.msra.mxu0 0.0
    %374 = vmatprep.subr.mxu0 0.0
    %375 = vmatpush1.msra.mxu0 0.0
    %376 = vmatprep.subr.mxu0 0.0
    %377 = vmatpush1.msra.mxu0 0.0
    %378 = vmatprep.subr.mxu0 0.0
    %379 = vmatpush1.msra.mxu0 0.0
    %380 = vmatprep.mubr.f32.mxu0 0.0
    %381 = vmatmul.mubr.f32.gmra.mrb[0].mxu0 %v292
    %v382 = vpop.f32.mrb[0].mxu0
    %v383 = vadd.f32 %v314, %v382
    %v384 = vpop.f32.mrb[0].mxu0
    %385 = vdwg.mxu0
    %vm386 = vcmask 64512
    %387 = vst.msk [vmem:[#allocation14] sm:$0xff] %vm386, %v383
    // Predicated region
    $region58: #{tpu_custom_call.1} parent=1 // pred_check
      _
    $region59: #{tpu_custom_call.1} parent=1 // pred_check_branch
      %389 = sbr.rel (0) target = $region61
    $region60: #{tpu_custom_call.1} parent=1 // pred_region
      %s391 = ssub.s32 128, 128
      %392 = vsyncadd [#allocation4], %s391
      %s394 = sshll.u32 [#allocation14], 4
      %s395 = int_to_ptr.vmem [resolvable:$true] %s394
      %397 = dma.vmem_to_hbm [thread:$0]  %s395, 128, %s7, [#allocation4]
    $region61: #{tpu_custom_call.1} parent=1 // pred_fallthru
      _
    // Predicated region
    $region62: #{tpu_custom_call.1} parent=1 // pred_check
      _
    $region63: #{tpu_custom_call.1} parent=1 // pred_check_branch
      %399 = sbr.rel (0) target = $region65
    $region64: #{tpu_custom_call.1} parent=1 // pred_region
      %400 = dma.done [#allocation4], 128
    $region65: #{tpu_custom_call.1} parent=1 // pred_fallthru
      _
    %401 = vsyncpa [#allocation3], 1
    %402 = vsyncpa [#allocation6], 1
    %403 = vsyncpa [#allocation9], 1
    %404 = vsyncpa [#allocation12], 1
    %405 = vsyncpa [#allocation4], 1

</llo_original>
